<compile_context>
chip_gen: v7x
topology: tpu7x:2x2x1
jax: 0.10.0
libtpu: 0.0.40
codegen_flags: <defaults>
</compile_context>

<pallas_src>
from functools import partial

import jax
import jax.numpy as jnp
from jax.experimental import pallas as pl
from jax.experimental.pallas import tpu as pltpu

DT = 0.1
MAX_ROW_TILE = 2048  # rows of 128 lanes per grid step (= 256K samples, ~10 MiB dbl-buffered)


def idm_kernel(x_ref, out_ref, *, s_0, T, a, inv_vd, inv_2sqrt_ab, dt):
    # x_ref:   VMEM (4, ROW_TILE, 128) f32, features = [y, v, s, delta_v]
    # out_ref: VMEM (ROW_TILE, 128)   f32
    y = x_ref[0]
    v = x_ref[1]
    s = x_ref[2]
    delta_v = x_ref[3]

    # s_x = s_0 + v*T + v*delta_v / (2*sqrt(a*b))   (divide folded at trace time)
    s_x = s_0 + v * T + (v * delta_v) * inv_2sqrt_ab

    # a_f = a * (1 - (v/v_d)^4 - (s_x/s)^2)
    rv = v * inv_vd          # hoisted once, reused for the 4th power
    rv2 = rv * rv
    r_s = s_x / s            # exact divide; hides under DMA (kernel is HBM-bound)
    a_f = a * (1.0 - rv2 * rv2 - r_s * r_s)

    v_pred = v + a_f * dt
    # TODO(synk): PyTorch's `v_pred[i] == 0` clamp loop is a no-op (== not =), so no clamp.
    out_ref[...] = y + v_pred * dt


def _round_up(x, m):
    return ((x + m - 1) // m) * m


@partial(jax.jit, static_argnums=(1, 2, 3, 4, 5))
def _idm_pallas(inputs_IDM, s_0, T, a, b, v_d):
    """Layout prep + pallas_call + output reshape, all fused under one jit."""
    N = inputs_IDM.shape[0]

    # Tile sizing: rows of 128 lanes, rows multiple of 8 (sublane tile).
    rows = _round_up(pl.cdiv(N, 128), 8)
    if rows <= 8:
        row_tile = rows                       # tiny input: single step
    elif rows <= 2 * MAX_ROW_TILE:
        total_rows = _round_up(rows, 16)
        row_tile = total_rows // 2            # exactly 2 parallel steps (v7x: 2 TCs)
    else:
        row_tile = MAX_ROW_TILE
    total_rows = _round_up(rows, row_tile)
    grid = total_rows // row_tile
    n_pad = total_rows * 128

    # Feature-major, lane+sublane dense layout: (4, total_rows, 128).
    x = inputs_IDM.astype(jnp.float32).T      # (4, N)
    if n_pad != N:
        # pad with 1.0 so the (discarded) padded lanes don't divide by zero
        x = jnp.pad(x, ((0, 0), (0, n_pad - N)), constant_values=1.0)
    x = x.reshape(4, total_rows, 128)

    kernel = partial(
        idm_kernel,
        s_0=float(s_0),
        T=float(T),
        a=float(a),
        inv_vd=1.0 / float(v_d),
        inv_2sqrt_ab=1.0 / (2.0 * (float(a) * float(b)) ** 0.5),
        dt=DT,
    )

    out = pl.pallas_call(
        kernel,
        out_shape=jax.ShapeDtypeStruct((total_rows, 128), jnp.float32),
        grid_spec=pl.GridSpec(
            grid=(grid,),
            in_specs=[pl.BlockSpec((4, row_tile, 128), lambda i: (0, i, 0))],
            out_specs=pl.BlockSpec((row_tile, 128), lambda i: (i, 0)),
        ),
        compiler_params=pltpu.CompilerParams(
            dimension_semantics=("parallel",),   # shard grid steps over 2 TCs on v7x
            vmem_limit_bytes=32 * 1024 * 1024,   # ample headroom on v5e/v6e/v7x
        ),
    )(x)

    # un-pad + PyTorch's unsqueeze(1).unsqueeze(2)
    return out.reshape(-1)[:N].reshape(N, 1, 1)


def idm_forward(inputs_IDM, his_labels, s_0, T, a, b, v_d):
    """Mirrors IDMModel.forward. his_labels is unused (as in the reference)."""
    del his_labels
    output_IDM = _idm_pallas(
        inputs_IDM, float(s_0), float(T), float(a), float(b), float(v_d)
    )
    return (
        output_IDM,
        jnp.array([s_0], dtype=jnp.float32),
        jnp.array([T], dtype=jnp.float32),
        jnp.array([a], dtype=jnp.float32),
        jnp.array([b], dtype=jnp.float32),
        jnp.array([v_d], dtype=jnp.float32),
    )


def idm_ref(inputs_IDM, s_0, T, a, b, v_d):
    """Pure-JAX reference (matches the PyTorch formulation exactly)."""
    y = inputs_IDM[:, 0]
    v = inputs_IDM[:, 1]
    s = inputs_IDM[:, 2]
    delta_v = inputs_IDM[:, 3]
    s_x = s_0 + v * T + v * delta_v / (2.0 * (a * b) ** 0.5)
    a_f = a * (1.0 - (v / v_d) ** 4 - (s_x / s) ** 2)
    v_pred = v + a_f * DT
    return (y + v_pred * DT)[:, None, None]


def _make_inputs(key, N):
    k1, k2, k3, k4, k5 = jax.random.split(key, 5)
    y = jax.random.uniform(k1, (N,), jnp.float32, 0.0, 50.0)   # position
    v = jax.random.uniform(k2, (N,), jnp.float32, 1.0, 15.0)   # speed
    s = jax.random.uniform(k3, (N,), jnp.float32, 5.0, 40.0)   # gap
    dv = jax.random.uniform(k4, (N,), jnp.float32, -3.0, 3.0)  # speed diff
    inputs_IDM = jnp.stack([y, v, s, dv], axis=1)              # (N, 4)
    his_labels = jax.random.normal(k5, (N, 1), jnp.float32)    # unused
    return inputs_IDM, his_labels


if __name__ == "__main__":
    # Deterministic IDM parameter values (module defaults).
    s_0, T, a, b, v_d = 1.667, 0.504, 0.43, 3.216, 16.775

    # Small-shape check (N=8 -> single 8x128 tile after padding).
    inputs_IDM, his_labels = _make_inputs(jax.random.PRNGKey(0), 8)
    outs = idm_forward(inputs_IDM, his_labels, s_0, T, a, b, v_d)
    out_IDM = jax.block_until_ready(outs[0])
    ref = idm_ref(inputs_IDM, s_0, T, a, b, v_d)
    assert out_IDM.shape == (8, 1, 1)
    assert jnp.allclose(out_IDM, ref, rtol=1e-5, atol=1e-5), "mismatch vs reference (N=8)"

    # Padding check (N=1000 -> 8 rows of 128 lanes, single grid step).
    inputs_mid, labels_mid = _make_inputs(jax.random.PRNGKey(1), 1000)
    outs_mid = idm_forward(inputs_mid, labels_mid, s_0, T, a, b, v_d)
    out_mid = jax.block_until_ready(outs_mid[0])
    ref_mid = idm_ref(inputs_mid, s_0, T, a, b, v_d)
    assert out_mid.shape == (1000, 1, 1)
    assert jnp.allclose(out_mid, ref_mid, rtol=1e-5, atol=1e-5), "mismatch vs reference (N=1000)"

    # Multi-step check (N=5000 -> 2 'parallel' grid steps + padded tail lanes).
    inputs_big, labels_big = _make_inputs(jax.random.PRNGKey(2), 5000)
    outs_big = idm_forward(inputs_big, labels_big, s_0, T, a, b, v_d)
    out_big = jax.block_until_ready(outs_big[0])
    ref_big = idm_ref(inputs_big, s_0, T, a, b, v_d)
    assert out_big.shape == (5000, 1, 1)
    assert jnp.allclose(out_big, ref_big, rtol=1e-5, atol=1e-5), "mismatch vs reference (N=5000)"

    print("KERNEL_OK")
</pallas_src>

<mosaic_0001>
module attributes {stable_mosaic.version = 11 : i64} {
  func.func @idm_kernel(%arg0: i32, %arg1: memref<4x8x128xf32, #tpu.memory_space<vmem>>, %arg2: memref<8x128xf32, #tpu.memory_space<vmem>>) attributes {dimension_semantics = [#tpu.dimension_semantics<parallel>], iteration_bounds = array<i64: 1>, scalar_prefetch = 0 : i64, scratch_operands = 0 : i64, tpu.core_type = #tpu.core_type<tc>, window_params = [{transform_indices = @transform_0, window_bounds = array<i64: 4, 8, 128>}, {transform_indices = @transform_1, window_bounds = array<i64: 8, 128>}]} {
    %c0 = arith.constant 0 : index
    %c0_0 = arith.constant 0 : index
    %c0_1 = arith.constant 0 : index
    %0 = vector.load %arg1[%c0, %c0_0, %c0_1] : memref<4x8x128xf32, #tpu.memory_space<vmem>>, vector<1x8x128xf32>
    %1 = vector.shape_cast %0 : vector<1x8x128xf32> to vector<8x128xf32>
    %c1 = arith.constant 1 : index
    %c0_2 = arith.constant 0 : index
    %c0_3 = arith.constant 0 : index
    %2 = vector.load %arg1[%c1, %c0_2, %c0_3] : memref<4x8x128xf32, #tpu.memory_space<vmem>>, vector<1x8x128xf32>
    %3 = vector.shape_cast %2 : vector<1x8x128xf32> to vector<8x128xf32>
    %c2 = arith.constant 2 : index
    %c0_4 = arith.constant 0 : index
    %c0_5 = arith.constant 0 : index
    %4 = vector.load %arg1[%c2, %c0_4, %c0_5] : memref<4x8x128xf32, #tpu.memory_space<vmem>>, vector<1x8x128xf32>
    %5 = vector.shape_cast %4 : vector<1x8x128xf32> to vector<8x128xf32>
    %c3 = arith.constant 3 : index
    %c0_6 = arith.constant 0 : index
    %c0_7 = arith.constant 0 : index
    %6 = vector.load %arg1[%c3, %c0_6, %c0_7] : memref<4x8x128xf32, #tpu.memory_space<vmem>>, vector<1x8x128xf32>
    %7 = vector.shape_cast %6 : vector<1x8x128xf32> to vector<8x128xf32>
    %cst = arith.constant 5.040000e-01 : f32
    %8 = vector.broadcast %cst : f32 to vector<8x128xf32>
    %9 = arith.mulf %3, %8 : vector<8x128xf32>
    %cst_8 = arith.constant 1.667000e+00 : f32
    %10 = vector.broadcast %cst_8 : f32 to vector<8x128xf32>
    %11 = arith.addf %10, %9 : vector<8x128xf32>
    %12 = arith.mulf %3, %7 : vector<8x128xf32>
    %cst_9 = arith.constant 0.425184816 : f32
    %13 = vector.broadcast %cst_9 : f32 to vector<8x128xf32>
    %14 = arith.mulf %12, %13 : vector<8x128xf32>
    %15 = arith.addf %11, %14 : vector<8x128xf32>
    %cst_10 = arith.constant 0.05961252 : f32
    %16 = vector.broadcast %cst_10 : f32 to vector<8x128xf32>
    %17 = arith.mulf %3, %16 : vector<8x128xf32>
    %18 = arith.mulf %17, %17 : vector<8x128xf32>
    %19 = arith.divf %15, %5 : vector<8x128xf32>
    %20 = arith.mulf %18, %18 : vector<8x128xf32>
    %cst_11 = arith.constant 1.000000e+00 : f32
    %21 = vector.broadcast %cst_11 : f32 to vector<8x128xf32>
    %22 = arith.subf %21, %20 : vector<8x128xf32>
    %23 = arith.mulf %19, %19 : vector<8x128xf32>
    %24 = arith.subf %22, %23 : vector<8x128xf32>
    %cst_12 = arith.constant 4.300000e-01 : f32
    %25 = vector.broadcast %cst_12 : f32 to vector<8x128xf32>
    %26 = arith.mulf %25, %24 : vector<8x128xf32>
    %cst_13 = arith.constant 1.000000e-01 : f32
    %27 = vector.broadcast %cst_13 : f32 to vector<8x128xf32>
    %28 = arith.mulf %26, %27 : vector<8x128xf32>
    %29 = arith.addf %3, %28 : vector<8x128xf32>
    %cst_14 = arith.constant 1.000000e-01 : f32
    %30 = vector.broadcast %cst_14 : f32 to vector<8x128xf32>
    %31 = arith.mulf %29, %30 : vector<8x128xf32>
    %32 = arith.addf %1, %31 : vector<8x128xf32>
    %c0_15 = arith.constant 0 : index
    %c0_16 = arith.constant 0 : index
    %33 = vector.load %arg2[%c0_15, %c0_16] : memref<8x128xf32, #tpu.memory_space<vmem>>, vector<8x128xf32>
    tpu.vector_store %arg2[%c0_15, %c0_16], %32 {strides = array<i32>} : memref<8x128xf32, #tpu.memory_space<vmem>>, vector<8x128xf32>,
    return
  }
  func.func @transform_0(%arg0: i32) -> (i32, i32, i32) {
    %c0_i32 = arith.constant 0 : i32
    %c0_i32_0 = arith.constant 0 : i32
    %c0_i32_1 = arith.constant 0 : i32
    return %c0_i32, %arg0, %c0_i32_0 : i32, i32, i32
  }
  func.func @transform_1(%arg0: i32) -> (i32, i32) {
    %c0_i32 = arith.constant 0 : i32
    %c0_i32_0 = arith.constant 0 : i32
    return %arg0, %c0_i32 : i32, i32
  }
}

</mosaic_0001>

<llo_original>
// kernel: _idm_pallas.1
$region0: #{_idm_pallas.1}
  #allocation0 [shape = 'u32[]', space=smem, size = 0x4, offset = 0x4, fixed_abs, tag = 'smem constant byte address 0x4 - core index']
  #allocation1 [shape = 'u32[144,128]{1,0:T(1,128)}', space=vmem, size = 0x12000, scoped, tag = 'internal scratch']
  %s0 = inlined_call_operand.vmem [shape: f32[4,8,128], index: 0, kind: input, shape index: {}]
  %s1 = inlined_call_operand.vmem [shape: f32[8,128], index: 1, kind: output, shape index: {}]
  %s2 = sld [smem:[#allocation0]]
  $region14: #{_idm_pallas.1} parent=0
    _
  %s4 = ssub.s32 1, %s2
  %s5 = scalar_select 0, %s4, %s2
  // Predicated region
  $region2: #{_idm_pallas.1} parent=0 // pred_check
    _
  $region3: #{_idm_pallas.1} parent=0 // pred_check_branch
    %7 = sbr.rel (0) target = $region5
  $region4: #{_idm_pallas.1} parent=0 // pred_region
    _
  $region5: #{_idm_pallas.1} parent=0 // pred_fallthru
    _
  %v8 = vld [vmem:[%s0] sm:$0xff]
  %s9 = scalar_lea.vmem %s0, 8
  %v10 = vld [vmem:[%s9] sm:$0xff]
  %s11 = scalar_lea.vmem %s0, 16
  %v12 = vld [vmem:[%s11] sm:$0xff]
  %s13 = scalar_lea.vmem %s0, 24
  %v14 = vld [vmem:[%s13] sm:$0xff]
  %v15 = vmul.f32 %v10, 0.504
  %v16 = vadd.f32 %v15, 1.667
  %v17 = vmul.f32 %v10, %v14
  %v18 = vmul.f32 %v17, 0.42518482
  %v19 = vadd.f32 %v16, %v18
  %v20 = vmul.f32 %v10, 0.05961252
  %v21 = vmul.f32 %v20, %v20
  %v22 = vrcp.pop %v12
  %v23 = vmul.f32 %v19, %v22
  %v24 = vmul.f32 %v21, %v21
  %v25 = vsub.f32 1.0, %v24
  %v26 = vmul.f32 %v23, %v23
  %v27 = vsub.f32 %v25, %v26
  %v28 = vmul.f32 %v27, 0.43
  %v29 = vmul.f32 %v28, 0.1
  %v30 = vadd.f32 %v10, %v29
  %v31 = vmul.f32 %v30, 0.1
  %v32 = vadd.f32 %v8, %v31
  %33 = vst [vmem:[%s1] sm:$0xff] %v32
  // Predicated region
  $region6: #{_idm_pallas.1} parent=0 // pred_check
    _
  $region7: #{_idm_pallas.1} parent=0 // pred_check_branch
    %35 = sbr.rel (0) target = $region9
  $region8: #{_idm_pallas.1} parent=0 // pred_region
    _
  $region9: #{_idm_pallas.1} parent=0 // pred_fallthru
    _
  // Predicated region
  $region10: #{_idm_pallas.1} parent=0 // pred_check
    _
  $region11: #{_idm_pallas.1} parent=0 // pred_check_branch
    %37 = sbr.rel (0) target = $region13
  $region12: #{_idm_pallas.1} parent=0 // pred_region
    _
  $region13: #{_idm_pallas.1} parent=0 // pred_fallthru
    _

</llo_original>
